<compile_context>
chip_gen: v6e
topology: v6e:2x2x1
jax: 0.10.0
libtpu: 0.0.40
codegen_flags: <defaults>
</compile_context>

<pallas_src>
import functools
import math

import jax
import jax.numpy as jnp
from jax import lax
from jax.experimental import pallas as pl
from jax.experimental.pallas import tpu as pltpu

K = 5        # Conv1d kernel size of every conv in the module
PAD = 2      # 'same' padding for conv1 / conv2
BN_EPS = 1e-5


# --------------------------------------------------------------------------- #
# In-kernel helpers
# --------------------------------------------------------------------------- #
def _tap_matmul(act_bf16, w_ref, out_len, n_out_ch):
    """K accumulated per-tap MXU matmuls (replaces the 5x im2col duplication).

    act_bf16: (BT, out_len + taps - 1, C) bf16 value (already zero padded for
    'same' convs).  w_ref: (K, C, n_out_ch) bf16 ref.  Returns (BT*out_len,
    n_out_ch) f32.
    """
    bt, _, c = act_bf16.shape
    acc = jnp.zeros((bt * out_len, n_out_ch), jnp.float32)
    for k in range(K):  # static K=5 -> unrolled; f32 accumulation
        lhs = act_bf16[:, k:k + out_len, :].reshape(bt * out_len, c)
        acc = acc + jnp.dot(lhs, w_ref[k], preferred_element_type=jnp.float32)
    return acc


def _partial_bn_stats(h2d, stats_ref):
    """Single-pass per-channel (sum, sum-of-squares) partials for this tile."""
    s = jnp.sum(h2d, axis=0, keepdims=True)
    s2 = jnp.sum(h2d * h2d, axis=0, keepdims=True)
    stats_ref[...] = jnp.concatenate([s, s2], axis=0).reshape(stats_ref.shape)


# --------------------------------------------------------------------------- #
# Stage kernels (each gridded over batch tiles, "parallel")
# --------------------------------------------------------------------------- #
def conv1_kernel(x_ref, w1_ref, b1_ref, h1_ref, stats_ref):
    # conv1 ('same', k=5) + bias + ReLU, plus fused partial BN statistics.
    bt, seq, cin = x_ref.shape
    hid = w1_ref.shape[2]
    zp = jnp.zeros((bt, PAD, cin), jnp.bfloat16)            # pad in registers
    xp = jnp.concatenate([zp, x_ref[...], zp], axis=1)      # (BT, L+4, Cin) bf16
    h = jnp.maximum(_tap_matmul(xp, w1_ref, seq, hid) + b1_ref[...], 0.0)
    h1_ref[...] = h                                          # (BT*L, H) f32
    _partial_bn_stats(h, stats_ref)


def conv2_kernel(h1_ref, scale_ref, shift_ref, w2_ref, b2_ref,
                 h2_ref, stats_ref, *, seq_len):
    # bn1 affine + MaxPool1d(2) + conv2 ('same', k=5) + ReLU + partial BN stats.
    rows, hid = h1_ref.shape
    bt = rows // seq_len
    lh = seq_len // 2
    scale = scale_ref[...]
    shift = shift_ref[...]
    # maxpool(bn1(h1)) == elementwise max of the BN'd even / odd time rows:
    # two strided sublane loads + affine + one VPU max (no 4-D relayout).
    even = h1_ref[pl.ds(0, bt * lh, 2), :] * scale + shift
    odd = h1_ref[pl.ds(1, bt * lh, 2), :] * scale + shift
    hp = jnp.maximum(even, odd).astype(jnp.bfloat16).reshape(bt, lh, hid)
    zp = jnp.zeros((bt, PAD, hid), jnp.bfloat16)
    hpp = jnp.concatenate([zp, hp, zp], axis=1)              # (BT, Lh+4, H) bf16
    h2 = jnp.maximum(_tap_matmul(hpp, w2_ref, lh, hid) + b2_ref[...], 0.0)
    h2_ref[...] = h2                                         # (BT*Lh, H) f32
    _partial_bn_stats(h2, stats_ref)


def out_kernel(h2_ref, scale_ref, shift_ref, woc_ref, boc_ref, out_ref, *, seq_len):
    # bn1 affine again + fused conv_out/conv_att ('valid', k=5) + softmax(time)
    # + attention-weighted temporal mean.
    rows, hid = h2_ref.shape
    bt = rows // seq_len
    lo = seq_len - K + 1
    n_out = out_ref.shape[1]
    hb = (h2_ref[...] * scale_ref[...] + shift_ref[...]).astype(jnp.bfloat16)
    hb = hb.reshape(bt, seq_len, hid)
    y = _tap_matmul(hb, woc_ref, lo, n_out + 1) + boc_ref[...]
    y = y.reshape(bt, lo, n_out + 1)
    val = y[:, :, :n_out]                                    # (BT, Lo, n_out)
    att = y[:, :, n_out:]                                    # (BT, Lo, 1) logits
    m = jnp.max(att, axis=1, keepdims=True)                  # softmax over time
    e = jnp.exp(att - m)
    att = e * pl.reciprocal(jnp.sum(e, axis=1, keepdims=True), approx=True)
    out = jnp.sum(val * att, axis=1) * (1.0 / float(lo))     # (BT, n_out)
    out_ref[...] = out.astype(out_ref.dtype)


# --------------------------------------------------------------------------- #
# Host-side helpers
# --------------------------------------------------------------------------- #
def _vmem_limit_bytes():
    """Scoped-VMEM request sized per TPU generation (v7x: 64 MiB/TC; v5e/v6e:
    128 MiB), leaving headroom for Mosaic's internal scratch."""
    try:
        cap = pltpu.get_tpu_info().vmem_capacity_bytes
    except Exception:
        cap = 64 * 1024 * 1024
    return int(min(cap * 3 // 4, 96 * 1024 * 1024))


def _pick_batch_tile(batch, seq, n_hid, vmem_bytes):
    """Largest batch tile whose per-stage working set (f32 activations padded to
    128 lanes, bf16 copies, accumulators, double-buffered pipeline copies) fits
    comfortably in the scoped VMEM budget.  Partial-batch tiles are kept to
    multiples of 8 so block shapes / output writebacks stay sublane-aligned."""
    per_row = 4 * seq * max(n_hid, 128) * 10        # rough bytes per batch row
    max_rows = max(8, vmem_bytes // (3 * per_row))
    if batch <= max_rows:
        return batch
    best = None
    for bt in range(8, int(min(batch, max_rows)) + 1, 8):
        if batch % bt == 0:
            best = bt
    # TODO(synk): pad + mask ragged batches instead of one whole-batch tile.
    return best if best is not None else batch


def _bn_affine(partials, count, gamma, beta):
    """Cross-tile reduction of (sum, sum-of-squares) partials into the
    train-mode BatchNorm affine y = x*scale + shift (biased var, eps=1e-5)."""
    s = jnp.sum(partials[:, 0, :], axis=0)
    s2 = jnp.sum(partials[:, 1, :], axis=0)
    mean = s / count
    var = s2 / count - mean * mean                  # f32; fine at these scales
    scale = gamma * lax.rsqrt(var + BN_EPS)
    shift = beta - mean * scale
    return scale.reshape(1, -1), shift.reshape(1, -1)


def cnn_forward(x_ncl, params):
    """Forward pass. x_ncl: (B, n_in, L) in PyTorch NCL layout."""
    B, n_in, L = x_ncl.shape
    assert L % 2 == 0 and L // 2 >= K, "need even L with L//2 >= kernel size"
    Lh = L // 2
    n_hid = params["w1"].shape[0]
    n_out = params["w_out"].shape[0]

    # channel-last (B, T, C); early bf16 cast (halves input DMA, matches the
    # reference's bf16 conv-input precision).
    x = jnp.transpose(x_ncl, (0, 2, 1)).astype(jnp.bfloat16)

    def tapw(w):  # torch OIK (Cout, Cin, K) -> per-tap (K, Cin, Cout) bf16
        return jnp.transpose(w, (2, 1, 0)).astype(jnp.bfloat16)

    w1 = tapw(params["w1"])                                        # (K, n_in, H)
    w2 = tapw(params["w2"])                                        # (K, H, H)
    # conv_out and conv_att fused into one width-(n_out+1) weight (att = last col).
    w_oc = jnp.concatenate([tapw(params["w_out"]), tapw(params["w_att"])], axis=2)
    b1 = params["b1"].reshape(1, n_hid).astype(jnp.float32)
    b2 = params["b2"].reshape(1, n_hid).astype(jnp.float32)
    b_oc = jnp.concatenate([params["b_out"], params["b_att"]]).reshape(
        1, n_out + 1).astype(jnp.float32)
    gamma = params["gamma"].astype(jnp.float32)
    beta = params["beta"].astype(jnp.float32)

    vmem_lim = _vmem_limit_bytes()
    bt = _pick_batch_tile(B, L, n_hid, vmem_lim)
    nb = B // bt
    grid = (nb,)
    cp = pltpu.CompilerParams(dimension_semantics=("parallel",),
                              vmem_limit_bytes=vmem_lim)

    row3 = lambda i: (i, 0, 0)
    row2 = lambda i: (i, 0)
    const3 = lambda i: (0, 0, 0)
    const2 = lambda i: (0, 0)

    # -- stage 1: conv1 + ReLU, per-tile BN partials ---------------------------
    h1, part1 = pl.pallas_call(
        conv1_kernel,
        grid=grid,
        in_specs=[pl.BlockSpec((bt, L, n_in), row3),
                  pl.BlockSpec((K, n_in, n_hid), const3),      # resident weights
                  pl.BlockSpec((1, n_hid), const2)],
        out_specs=[pl.BlockSpec((bt * L, n_hid), row2),
                   pl.BlockSpec((1, 2, n_hid), row3)],
        out_shape=[jax.ShapeDtypeStruct((B * L, n_hid), jnp.float32),
                   jax.ShapeDtypeStruct((nb, 2, n_hid), jnp.float32)],
        compiler_params=cp,
    )(x, w1, b1)
    scale1, shift1 = _bn_affine(part1, B * L, gamma, beta)

    # -- stage 2: bn1 + maxpool + conv2 + ReLU, per-tile BN partials -----------
    h2, part2 = pl.pallas_call(
        functools.partial(conv2_kernel, seq_len=L),
        grid=grid,
        in_specs=[pl.BlockSpec((bt * L, n_hid), row2),
                  pl.BlockSpec((1, n_hid), const2),
                  pl.BlockSpec((1, n_hid), const2),
                  pl.BlockSpec((K, n_hid, n_hid), const3),
                  pl.BlockSpec((1, n_hid), const2)],
        out_specs=[pl.BlockSpec((bt * Lh, n_hid), row2),
                   pl.BlockSpec((1, 2, n_hid), row3)],
        out_shape=[jax.ShapeDtypeStruct((B * Lh, n_hid), jnp.float32),
                   jax.ShapeDtypeStruct((nb, 2, n_hid), jnp.float32)],
        compiler_params=cp,
    )(h1, scale1, shift1, w2, b2)
    scale2, shift2 = _bn_affine(part2, B * Lh, gamma, beta)

    # -- stage 3: bn1 again + fused conv_out/conv_att + softmax + mean ---------
    out = pl.pallas_call(
        functools.partial(out_kernel, seq_len=Lh),
        grid=grid,
        in_specs=[pl.BlockSpec((bt * Lh, n_hid), row2),
                  pl.BlockSpec((1, n_hid), const2),
                  pl.BlockSpec((1, n_hid), const2),
                  pl.BlockSpec((K, n_hid, n_out + 1), const3),
                  pl.BlockSpec((1, n_out + 1), const2)],
        out_specs=pl.BlockSpec((bt, n_out), row2),
        out_shape=jax.ShapeDtypeStruct((B, n_out), jnp.float32),
        compiler_params=cp,
    )(h2, scale2, shift2, w_oc, b_oc)
    return out


# --------------------------------------------------------------------------- #
# Parameters + pure-JAX reference (PyTorch semantics)
# --------------------------------------------------------------------------- #
def init_params(key, n_in, n_hid, n_out):
    ks = jax.random.split(key, 4)

    def conv_init(k, out_ch, in_ch):
        std = math.sqrt(2.0 / (K * out_ch))
        w = std * jax.random.normal(k, (out_ch, in_ch, K), jnp.float32)
        b = jnp.full((out_ch,), 0.1, jnp.float32)
        return w, b

    w1, b1 = conv_init(ks[0], n_hid, n_in)
    w2, b2 = conv_init(ks[1], n_hid, n_hid)
    w_out, b_out = conv_init(ks[2], n_out, n_hid)
    w_att, b_att = conv_init(ks[3], 1, n_hid)
    return dict(w1=w1, b1=b1, w2=w2, b2=b2,
                w_out=w_out, b_out=b_out, w_att=w_att, b_att=b_att,
                gamma=jnp.ones((n_hid,), jnp.float32),
                beta=jnp.zeros((n_hid,), jnp.float32))


def cnn_reference(x_ncl, p):
    # Pure-JAX reference with PyTorch NCL semantics; convs use the same
    # bf16 x bf16 -> f32 precision as the kernel's MXU matmuls.
    def conv1d(x, w, b, pad):
        y = lax.conv_general_dilated(
            x.astype(jnp.bfloat16), w.astype(jnp.bfloat16),
            window_strides=(1,), padding=[(pad, pad)],
            dimension_numbers=("NCH", "OIH", "NCH"),
            preferred_element_type=jnp.float32)
        return y + b[None, :, None]

    def bn(x, g, bt):
        mean = x.mean(axis=(0, 2), keepdims=True)
        var = ((x - mean) ** 2).mean(axis=(0, 2), keepdims=True)
        return (x - mean) / jnp.sqrt(var + BN_EPS) * g[None, :, None] + bt[None, :, None]

    h = jax.nn.relu(conv1d(x_ncl, p["w1"], p["b1"], PAD))
    h = bn(h, p["gamma"], p["beta"])
    B, C, L = h.shape
    h = h.reshape(B, C, L // 2, 2).max(axis=3)               # MaxPool1d(2)
    h = jax.nn.relu(conv1d(h, p["w2"], p["b2"], PAD))
    h = bn(h, p["gamma"], p["beta"])                          # bn1 reused
    val = conv1d(h, p["w_out"], p["b_out"], 0)
    att = jax.nn.softmax(conv1d(h, p["w_att"], p["b_att"], 0), axis=2)
    return (val * att).mean(axis=2)


if __name__ == "__main__":
    B, n_in, L = 2, 4, 16
    n_hid, n_out = 32, 8

    key = jax.random.PRNGKey(0)
    kx, kp = jax.random.split(key)
    x = jax.random.normal(kx, (B, n_in, L), jnp.float32)      # PyTorch NCL input
    params = init_params(kp, n_in, n_hid, n_out)

    out = jax.block_until_ready(cnn_forward(x, params))
    ref = cnn_reference(x, params)
    assert out.shape == (B, n_out)
    assert jnp.allclose(out, ref, rtol=2e-3, atol=3e-3), (out, ref)
    print("KERNEL_OK")
</pallas_src>

<mosaic_0001>
module attributes {stable_mosaic.version = 11 : i64} {
  func.func @conv1_kernel(%arg0: i32, %arg1: memref<2x16x4xbf16, #tpu.memory_space<vmem>>, %arg2: memref<5x4x32xbf16, #tpu.memory_space<vmem>>, %arg3: memref<1x32xf32, #tpu.memory_space<vmem>>, %arg4: memref<32x32xf32, #tpu.memory_space<vmem>>, %arg5: memref<1x2x32xf32, #tpu.memory_space<vmem>>) attributes {dimension_semantics = [#tpu.dimension_semantics<parallel>], iteration_bounds = array<i64: 1>, scalar_prefetch = 0 : i64, scratch_operands = 0 : i64, tpu.core_type = #tpu.core_type<tc>, window_params = [{transform_indices = @transform_0, window_bounds = array<i64: 2, 16, 4>}, {pipeline_mode = #tpu.pipeline_mode<synchronous>, transform_indices = @transform_1, window_bounds = array<i64: 5, 4, 32>}, {pipeline_mode = #tpu.pipeline_mode<synchronous>, transform_indices = @transform_2, window_bounds = array<i64: 1, 32>}, {transform_indices = @transform_3, window_bounds = array<i64: 32, 32>}, {transform_indices = @transform_4, window_bounds = array<i64: 1, 2, 32>}]} {
    %cst = arith.constant 0.000000e+00 : bf16
    %0 = vector.broadcast %cst : bf16 to vector<2x2x4xbf16>
    %c0 = arith.constant 0 : index
    %c0_0 = arith.constant 0 : index
    %c0_1 = arith.constant 0 : index
    %1 = vector.load %arg1[%c0, %c0_0, %c0_1] : memref<2x16x4xbf16, #tpu.memory_space<vmem>>, vector<2x16x4xbf16>
    %2 = tpu.concatenate %0, %1, %0 in 1 : vector<2x2x4xbf16>, vector<2x16x4xbf16>, vector<2x2x4xbf16> -> vector<2x20x4xbf16>
    %cst_2 = arith.constant 0.000000e+00 : f32
    %3 = vector.broadcast %cst_2 : f32 to vector<32x32xf32>
    %4 = vector.extract_strided_slice %2 {offsets = [0, 0, 0], sizes = [2, 16, 4], strides = [1, 1, 1]} : vector<2x20x4xbf16> to vector<2x16x4xbf16>
    %5 = vector.shape_cast %4 : vector<2x16x4xbf16> to vector<32x4xbf16>
    %c0_3 = arith.constant 0 : index
    %c0_4 = arith.constant 0 : index
    %c0_5 = arith.constant 0 : index
    %6 = vector.load %arg2[%c0_3, %c0_4, %c0_5] : memref<5x4x32xbf16, #tpu.memory_space<vmem>>, vector<1x4x32xbf16>
    %7 = vector.shape_cast %6 : vector<1x4x32xbf16> to vector<4x32xbf16>
    %cst_6 = arith.constant dense<0.000000e+00> : vector<32x32xf32>
    %8 = tpu.matmul %5, %7, %cst_6 {dimension_numbers = #tpu.dot_dimension_numbers<[1], [0], [0], [1], [0, 0, 1, 1], [], []>} : vector<32x4xbf16>, vector<4x32xbf16>, vector<32x32xf32> -> vector<32x32xf32>
    %9 = arith.addf %3, %8 : vector<32x32xf32>
    %10 = vector.extract_strided_slice %2 {offsets = [0, 1, 0], sizes = [2, 16, 4], strides = [1, 1, 1]} : vector<2x20x4xbf16> to vector<2x16x4xbf16>
    %11 = vector.shape_cast %10 : vector<2x16x4xbf16> to vector<32x4xbf16>
    %c1 = arith.constant 1 : index
    %c0_7 = arith.constant 0 : index
    %c0_8 = arith.constant 0 : index
    %12 = vector.load %arg2[%c1, %c0_7, %c0_8] : memref<5x4x32xbf16, #tpu.memory_space<vmem>>, vector<1x4x32xbf16>
    %13 = vector.shape_cast %12 : vector<1x4x32xbf16> to vector<4x32xbf16>
    %cst_9 = arith.constant dense<0.000000e+00> : vector<32x32xf32>
    %14 = tpu.matmul %11, %13, %cst_9 {dimension_numbers = #tpu.dot_dimension_numbers<[1], [0], [0], [1], [0, 0, 1, 1], [], []>} : vector<32x4xbf16>, vector<4x32xbf16>, vector<32x32xf32> -> vector<32x32xf32>
    %15 = arith.addf %9, %14 : vector<32x32xf32>
    %16 = vector.extract_strided_slice %2 {offsets = [0, 2, 0], sizes = [2, 16, 4], strides = [1, 1, 1]} : vector<2x20x4xbf16> to vector<2x16x4xbf16>
    %17 = vector.shape_cast %16 : vector<2x16x4xbf16> to vector<32x4xbf16>
    %c2 = arith.constant 2 : index
    %c0_10 = arith.constant 0 : index
    %c0_11 = arith.constant 0 : index
    %18 = vector.load %arg2[%c2, %c0_10, %c0_11] : memref<5x4x32xbf16, #tpu.memory_space<vmem>>, vector<1x4x32xbf16>
    %19 = vector.shape_cast %18 : vector<1x4x32xbf16> to vector<4x32xbf16>
    %cst_12 = arith.constant dense<0.000000e+00> : vector<32x32xf32>
    %20 = tpu.matmul %17, %19, %cst_12 {dimension_numbers = #tpu.dot_dimension_numbers<[1], [0], [0], [1], [0, 0, 1, 1], [], []>} : vector<32x4xbf16>, vector<4x32xbf16>, vector<32x32xf32> -> vector<32x32xf32>
    %21 = arith.addf %15, %20 : vector<32x32xf32>
    %22 = vector.extract_strided_slice %2 {offsets = [0, 3, 0], sizes = [2, 16, 4], strides = [1, 1, 1]} : vector<2x20x4xbf16> to vector<2x16x4xbf16>
    %23 = vector.shape_cast %22 : vector<2x16x4xbf16> to vector<32x4xbf16>
    %c3 = arith.constant 3 : index
    %c0_13 = arith.constant 0 : index
    %c0_14 = arith.constant 0 : index
    %24 = vector.load %arg2[%c3, %c0_13, %c0_14] : memref<5x4x32xbf16, #tpu.memory_space<vmem>>, vector<1x4x32xbf16>
    %25 = vector.shape_cast %24 : vector<1x4x32xbf16> to vector<4x32xbf16>
    %cst_15 = arith.constant dense<0.000000e+00> : vector<32x32xf32>
    %26 = tpu.matmul %23, %25, %cst_15 {dimension_numbers = #tpu.dot_dimension_numbers<[1], [0], [0], [1], [0, 0, 1, 1], [], []>} : vector<32x4xbf16>, vector<4x32xbf16>, vector<32x32xf32> -> vector<32x32xf32>
    %27 = arith.addf %21, %26 : vector<32x32xf32>
    %28 = vector.extract_strided_slice %2 {offsets = [0, 4, 0], sizes = [2, 16, 4], strides = [1, 1, 1]} : vector<2x20x4xbf16> to vector<2x16x4xbf16>
    %29 = vector.shape_cast %28 : vector<2x16x4xbf16> to vector<32x4xbf16>
    %c4 = arith.constant 4 : index
    %c0_16 = arith.constant 0 : index
    %c0_17 = arith.constant 0 : index
    %30 = vector.load %arg2[%c4, %c0_16, %c0_17] : memref<5x4x32xbf16, #tpu.memory_space<vmem>>, vector<1x4x32xbf16>
    %31 = vector.shape_cast %30 : vector<1x4x32xbf16> to vector<4x32xbf16>
    %cst_18 = arith.constant dense<0.000000e+00> : vector<32x32xf32>
    %32 = tpu.matmul %29, %31, %cst_18 {dimension_numbers = #tpu.dot_dimension_numbers<[1], [0], [0], [1], [0, 0, 1, 1], [], []>} : vector<32x4xbf16>, vector<4x32xbf16>, vector<32x32xf32> -> vector<32x32xf32>
    %33 = arith.addf %27, %32 : vector<32x32xf32>
    %c0_19 = arith.constant 0 : index
    %c0_20 = arith.constant 0 : index
    %34 = vector.load %arg3[%c0_19, %c0_20] : memref<1x32xf32, #tpu.memory_space<vmem>>, vector<1x32xf32>
    %35 = vector.broadcast %34 : vector<1x32xf32> to vector<32x32xf32>
    %36 = arith.addf %33, %35 : vector<32x32xf32>
    %cst_21 = arith.constant 0.000000e+00 : f32
    %37 = vector.broadcast %cst_21 : f32 to vector<32x32xf32>
    %38 = arith.maximumf %36, %37 : vector<32x32xf32>
    %c0_22 = arith.constant 0 : index
    %c0_23 = arith.constant 0 : index
    %39 = vector.load %arg4[%c0_22, %c0_23] : memref<32x32xf32, #tpu.memory_space<vmem>>, vector<32x32xf32>
    tpu.vector_store %arg4[%c0_22, %c0_23], %38 {strides = array<i32>} : memref<32x32xf32, #tpu.memory_space<vmem>>, vector<32x32xf32>,
    %cst_24 = arith.constant dense<0.000000e+00> : vector<32xf32>
    %40 = vector.multi_reduction <add>, %38, %cst_24 [0] : vector<32x32xf32> to vector<32xf32>
    %41 = vector.shape_cast %40 : vector<32xf32> to vector<1x32xf32>
    %42 = arith.mulf %38, %38 : vector<32x32xf32>
    %cst_25 = arith.constant dense<0.000000e+00> : vector<32xf32>
    %43 = vector.multi_reduction <add>, %42, %cst_25 [0] : vector<32x32xf32> to vector<32xf32>
    %44 = vector.shape_cast %43 : vector<32xf32> to vector<1x32xf32>
    %45 = tpu.concatenate %41, %44 in 0 : vector<1x32xf32>, vector<1x32xf32> -> vector<2x32xf32>
    %46 = vector.shape_cast %45 : vector<2x32xf32> to vector<1x2x32xf32>
    %c0_26 = arith.constant 0 : index
    %c0_27 = arith.constant 0 : index
    %c0_28 = arith.constant 0 : index
    %47 = vector.load %arg5[%c0_26, %c0_27, %c0_28] : memref<1x2x32xf32, #tpu.memory_space<vmem>>, vector<1x2x32xf32>
    tpu.vector_store %arg5[%c0_26, %c0_27, %c0_28], %46 {strides = array<i32>} : memref<1x2x32xf32, #tpu.memory_space<vmem>>, vector<1x2x32xf32>,
    return
  }
  func.func @transform_0(%arg0: i32) -> (i32, i32, i32) {
    %c0_i32 = arith.constant 0 : i32
    %c0_i32_0 = arith.constant 0 : i32
    %c0_i32_1 = arith.constant 0 : i32
    return %arg0, %c0_i32, %c0_i32_0 : i32, i32, i32
  }
  func.func @transform_1(%arg0: i32) -> (i32, i32, i32) {
    %c0_i32 = arith.constant 0 : i32
    %c0_i32_0 = arith.constant 0 : i32
    %c0_i32_1 = arith.constant 0 : i32
    %c0_i32_2 = arith.constant 0 : i32
    return %c0_i32, %c0_i32_0, %c0_i32_1 : i32, i32, i32
  }
  func.func @transform_2(%arg0: i32) -> (i32, i32) {
    %c0_i32 = arith.constant 0 : i32
    %c0_i32_0 = arith.constant 0 : i32
    %c0_i32_1 = arith.constant 0 : i32
    return %c0_i32, %c0_i32_0 : i32, i32
  }
  func.func @transform_3(%arg0: i32) -> (i32, i32) {
    %c0_i32 = arith.constant 0 : i32
    %c0_i32_0 = arith.constant 0 : i32
    return %arg0, %c0_i32 : i32, i32
  }
  func.func @transform_4(%arg0: i32) -> (i32, i32, i32) {
    %c0_i32 = arith.constant 0 : i32
    %c0_i32_0 = arith.constant 0 : i32
    %c0_i32_1 = arith.constant 0 : i32
    return %arg0, %c0_i32, %c0_i32_0 : i32, i32, i32
  }
}

</mosaic_0001>

<llo_original>
// kernel: tpu_custom_call.1
$region0: #{tpu_custom_call.1}
  #allocation0 [shape = 'u32[]', space=smem, size = 0x4, offset = 0x4, fixed_abs, tag = 'smem constant byte address 0x4 - core index']
  #allocation1 [shape = 'u32[144,128]{1,0:T(1,128)}', space=vmem, size = 0x12000, scoped, tag = 'internal scratch']
  %s0 = inlined_call_operand.vmem [shape: bf16[2,16,4], index: 0, kind: input, shape index: {}]
  %s1 = inlined_call_operand.vmem [shape: bf16[5,4,32], index: 1, kind: input, shape index: {}]
  %s2 = inlined_call_operand.vmem [shape: f32[1,32], index: 2, kind: input, shape index: {}]
  %s3 = inlined_call_operand.hbm [shape: f32[32,32], index: 3, kind: output, shape index: {0}]
  %s4 = inlined_call_operand.hbm [shape: f32[1,2,32], index: 4, kind: output, shape index: {1}]
  %5 = xla_tuple %s3, %s4
  %s6 = sld [smem:[#allocation0]]
  $region30: #{tpu_custom_call.1} parent=0
    _
  %s8 = ssub.s32 1, %s6
  %s9 = scalar_select 0, %s8, %s6
  $region1: #{tpu_custom_call.1} parent=0
    #allocation2 [shape = 'u8[16384]{0}', space=vmem, size = 0x4000, scoped, tag = 'output window, operand 0, single buffered']
    #allocation3 [shape = 's32[1]{0}', space=sflag, size = 0x4, scoped, tag = 'scoped memory for tpu_custom_call.1']
    #allocation4 [shape = 'u8[1024]{0}', space=vmem, size = 0x400, scoped, tag = 'output window, operand 1, single buffered']
    #allocation5 [shape = 's32[1]{0}', space=sflag, size = 0x4, scoped, tag = 'scoped memory for tpu_custom_call.1']
    %10 = vsyncpa [#allocation3], 0
    %11 = vsyncpa [#allocation5], 0
    // Predicated region
    $region2: #{tpu_custom_call.1} parent=1 // pred_check
      _
    $region3: #{tpu_custom_call.1} parent=1 // pred_check_branch
      %13 = sbr.rel (0) target = $region5
    $region4: #{tpu_custom_call.1} parent=1 // pred_region
      _
    $region5: #{tpu_custom_call.1} parent=1 // pred_fallthru
      _
    // Predicated region
    $region6: #{tpu_custom_call.1} parent=1 // pred_check
      _
    $region7: #{tpu_custom_call.1} parent=1 // pred_check_branch
      %15 = sbr.rel (0) target = $region9
    $region8: #{tpu_custom_call.1} parent=1 // pred_region
      _
    $region9: #{tpu_custom_call.1} parent=1 // pred_fallthru
      _
    // Predicated region
    $region10: #{tpu_custom_call.1} parent=1 // pred_check
      _
    $region11: #{tpu_custom_call.1} parent=1 // pred_check_branch
      %17 = sbr.rel (0) target = $region13
    $region12: #{tpu_custom_call.1} parent=1 // pred_region
      _
    $region13: #{tpu_custom_call.1} parent=1 // pred_fallthru
      _
    %v19 = vld [vmem:[%s0] sm:$0xf]
    %v20 = vld [vmem:[%s0 + $0x4] sm:$0xf]
    %v21 = vld [vmem:[%s0 + $0x8] sm:$0xf]
    %v22 = vld [vmem:[%s0 + $0xc] sm:$0xf]
    %v27 = vunpack.c.l.b16 %v19
    %v28 = vunpack.c.l.b16 %v20
    %v29 = vunpack.c.l.b16 %v21
    %v30 = vunpack.c.l.b16 %v22
    %v31 = vpack.c.b16 %v28, %v27
    %v32 = vpack.c.b16 %v30, %v29
    %v33 = vrot.slane %v31, 7
    %v34 = vrot.slane %v32, 7
    %vm35 = vcmask 1040384
    %v38 = vsel %vm35, 0, %v33
    %v40 = vsel %vm35, 0, %v34
    %v41 = vsel %vm35, %v33, 0
    %v42 = vsel %vm35, %v34, 0
    %v43 = vld [vmem:[%s1] sm:$0x3]
    %vm44 = vsmask.f32 7424
    %v45 = vshrl.u32 %v38, 16
    %v47 = vshll.u32 %v38, 16
    %v49 = vrot.slane %v47, 1
    %v50 = vor.u32 %v45, %v49
    %v51 = vshll.u32 %v41, 16
    %v53 = vrot.slane %v51, 1
    %v54 = vsel %vm44, %v50, %v53
    %v55 = vshrl.u32 %v40, 16
    %v57 = vshll.u32 %v40, 16
    %v59 = vrot.slane %v57, 1
    %v60 = vor.u32 %v55, %v59
    %v61 = vshll.u32 %v42, 16
    %v63 = vrot.slane %v61, 1
    %v64 = vsel %vm44, %v60, %v63
    %s65 = scalar_lea.vmem %s1, 2
    %v66 = vld [vmem:[%s65] sm:$0x3]
    %vm67 = vcmask 31744
    %v69 = vsel %vm67, %v54, 0
    %v72 = vsel %vm67, %v64, 0
    %vm74 = vcmask 1041408
    %v76 = vsel %vm74, %v66, 0
    %78 = vmatprep.subr.bf16.mxu0 0
    %79 = vmatpush1.bf16.msra.mxu0 0
    %80 = vmatprep.subr.bf16.mxu0 0
    %81 = vmatpush1.bf16.msra.mxu0 0
    %82 = vmatprep.subr.bf16.mxu0 0
    %83 = vmatpush1.bf16.msra.mxu0 0
    %84 = vmatprep.subr.bf16.mxu0 0
    %85 = vmatpush1.bf16.msra.mxu0 0
    %86 = vmatprep.subr.bf16.mxu0 0
    %87 = vmatpush1.bf16.msra.mxu0 0
    %88 = vmatprep.subr.bf16.mxu0 0
    %89 = vmatpush1.bf16.msra.mxu0 0
    %90 = vmatprep.subr.bf16.mxu0 0
    %91 = vmatpush1.bf16.msra.mxu0 0
    %92 = vmatprep.subr.bf16.mxu0 0
    %93 = vmatpush1.bf16.msra.mxu0 %v76
    %94 = vmatprep.subr.bf16.mxu0 0
    %95 = vmatpush2.bf16.msra.mxu0 0
    %96 = vmatprep.subr.bf16.mxu0 0
    %97 = vmatpush2.bf16.msra.mxu0 0
    %98 = vmatprep.subr.bf16.mxu0 0
    %99 = vmatpush2.bf16.msra.mxu0 0
    %100 = vmatprep.subr.bf16.mxu0 0
    %101 = vmatpush2.bf16.msra.mxu0 0
    %102 = vmatprep.subr.bf16.mxu0 0
    %103 = vmatpush2.bf16.msra.mxu0 0
    %104 = vmatprep.subr.bf16.mxu0 0
    %105 = vmatpush2.bf16.msra.mxu0 0
    %106 = vmatprep.subr.bf16.mxu0 0
    %107 = vmatpush2.bf16.msra.mxu0 0
    %108 = vmatprep.subr.bf16.mxu0 0
    %109 = vmatpush2.bf16.msra.mxu0 0
    %110 = vmatprep.mubr.bf16.mxu0 0
    %111 = vmatmul.mubr.bf16.gmra.mxu0 %v69
    %v112 = vpop.f32.mrf.mxu0
    %v113 = vadd.f32 0.0, %v112
    %v114 = vpop.f32.mrf.mxu0
    %v115 = vpop.f32.mrf.mxu0
    %v116 = vadd.f32 0.0, %v115
    %v117 = vpop.f32.mrf.mxu0
    %118 = vmatprep.mubr.bf16.mxu0 0
    %119 = vmatmul.mubr.bf16.gmra.mxu0 %v72
    %v120 = vpop.f32.mrf.mxu0
    %v121 = vadd.f32 0.0, %v120
    %v122 = vpop.f32.mrf.mxu0
    %v123 = vpop.f32.mrf.mxu0
    %v124 = vadd.f32 0.0, %v123
    %v125 = vpop.f32.mrf.mxu0
    %126 = vdwg.mxu0
    %v127 = vsel %vm67, %v38, 0
    %v129 = vsel %vm67, %v40, 0
    %v132 = vsel %vm74, %v43, 0
    %134 = vmatprep.subr.bf16.mxu0 0
    %135 = vmatpush1.bf16.msra.mxu0 0
    %136 = vmatprep.subr.bf16.mxu0 0
    %137 = vmatpush1.bf16.msra.mxu0 0
    %138 = vmatprep.subr.bf16.mxu0 0
    %139 = vmatpush1.bf16.msra.mxu0 0
    %140 = vmatprep.subr.bf16.mxu0 0
    %141 = vmatpush1.bf16.msra.mxu0 0
    %142 = vmatprep.subr.bf16.mxu0 0
    %143 = vmatpush1.bf16.msra.mxu0 0
    %144 = vmatprep.subr.bf16.mxu0 0
    %145 = vmatpush1.bf16.msra.mxu0 0
    %146 = vmatprep.subr.bf16.mxu0 0
    %147 = vmatpush1.bf16.msra.mxu0 0
    %148 = vmatprep.subr.bf16.mxu0 0
    %149 = vmatpush1.bf16.msra.mxu0 %v132
    %150 = vmatprep.subr.bf16.mxu0 0
    %151 = vmatpush2.bf16.msra.mxu0 0
    %152 = vmatprep.subr.bf16.mxu0 0
    %153 = vmatpush2.bf16.msra.mxu0 0
    %154 = vmatprep.subr.bf16.mxu0 0
    %155 = vmatpush2.bf16.msra.mxu0 0
    %156 = vmatprep.subr.bf16.mxu0 0
    %157 = vmatpush2.bf16.msra.mxu0 0
    %158 = vmatprep.subr.bf16.mxu0 0
    %159 = vmatpush2.bf16.msra.mxu0 0
    %160 = vmatprep.subr.bf16.mxu0 0
    %161 = vmatpush2.bf16.msra.mxu0 0
    %162 = vmatprep.subr.bf16.mxu0 0
    %163 = vmatpush2.bf16.msra.mxu0 0
    %164 = vmatprep.subr.bf16.mxu0 0
    %165 = vmatpush2.bf16.msra.mxu0 0
    %166 = vmatprep.mubr.bf16.mxu0 0
    %167 = vmatmul.mubr.bf16.gmra.mxu0 %v127
    %v168 = vpop.f32.mrf.mxu0
    %v169 = vadd.f32 %v113, %v168
    %v170 = vpop.f32.mrf.mxu0
    %v171 = vpop.f32.mrf.mxu0
    %v172 = vadd.f32 %v116, %v171
    %v173 = vpop.f32.mrf.mxu0
    %174 = vmatprep.mubr.bf16.mxu0 0
    %175 = vmatmul.mubr.bf16.gmra.mxu0 %v129
    %v176 = vpop.f32.mrf.mxu0
    %v177 = vadd.f32 %v121, %v176
    %v178 = vpop.f32.mrf.mxu0
    %v179 = vpop.f32.mrf.mxu0
    %v180 = vadd.f32 %v124, %v179
    %v181 = vpop.f32.mrf.mxu0
    %182 = vdwg.mxu0
    %vm187 = vcmask 1046528
    %v188 = vrot.slane %v38, 1
    %v189 = vrot.slane %v41, 1
    %v190 = vsel %vm187, %v188, %v189
    %v191 = vrot.slane %v40, 1
    %v192 = vrot.slane %v42, 1
    %v193 = vsel %vm187, %v191, %v192
    %s194 = scalar_lea.vmem %s1, 4
    %v195 = vld [vmem:[%s194] sm:$0x3]
    %v197 = vsel %vm67, %v190, 0
    %v200 = vsel %vm67, %v193, 0
    %v203 = vsel %vm74, %v195, 0
    %205 = vmatprep.subr.bf16.mxu0 0
    %206 = vmatpush1.bf16.msra.mxu0 0
    %207 = vmatprep.subr.bf16.mxu0 0
    %208 = vmatpush1.bf16.msra.mxu0 0
    %209 = vmatprep.subr.bf16.mxu0 0
    %210 = vmatpush1.bf16.msra.mxu0 0
    %211 = vmatprep.subr.bf16.mxu0 0
    %212 = vmatpush1.bf16.msra.mxu0 0
    %213 = vmatprep.subr.bf16.mxu0 0
    %214 = vmatpush1.bf16.msra.mxu0 0
    %215 = vmatprep.subr.bf16.mxu0 0
    %216 = vmatpush1.bf16.msra.mxu0 0
    %217 = vmatprep.subr.bf16.mxu0 0
    %218 = vmatpush1.bf16.msra.mxu0 0
    %219 = vmatprep.subr.bf16.mxu0 0
    %220 = vmatpush1.bf16.msra.mxu0 %v203
    %221 = vmatprep.subr.bf16.mxu0 0
    %222 = vmatpush2.bf16.msra.mxu0 0
    %223 = vmatprep.subr.bf16.mxu0 0
    %224 = vmatpush2.bf16.msra.mxu0 0
    %225 = vmatprep.subr.bf16.mxu0 0
    %226 = vmatpush2.bf16.msra.mxu0 0
    %227 = vmatprep.subr.bf16.mxu0 0
    %228 = vmatpush2.bf16.msra.mxu0 0
    %229 = vmatprep.subr.bf16.mxu0 0
    %230 = vmatpush2.bf16.msra.mxu0 0
    %231 = vmatprep.subr.bf16.mxu0 0
    %232 = vmatpush2.bf16.msra.mxu0 0
    %233 = vmatprep.subr.bf16.mxu0 0
    %234 = vmatpush2.bf16.msra.mxu0 0
    %235 = vmatprep.subr.bf16.mxu0 0
    %236 = vmatpush2.bf16.msra.mxu0 0
    %237 = vmatprep.mubr.bf16.mxu0 0
    %238 = vmatmul.mubr.bf16.gmra.mxu0 %v197
    %v239 = vpop.f32.mrf.mxu0
    %v240 = vadd.f32 0.0, %v239
    %v241 = vpop.f32.mrf.mxu0
    %v242 = vpop.f32.mrf.mxu0
    %v243 = vadd.f32 0.0, %v242
    %v244 = vpop.f32.mrf.mxu0
    %245 = vmatprep.mubr.bf16.mxu0 0
    %246 = vmatmul.mubr.bf16.gmra.mxu0 %v200
    %v247 = vpop.f32.mrf.mxu0
    %v248 = vadd.f32 0.0, %v247
    %v249 = vpop.f32.mrf.mxu0
    %v250 = vpop.f32.mrf.mxu0
    %v251 = vadd.f32 0.0, %v250
    %v252 = vpop.f32.mrf.mxu0
    %253 = vdwg.mxu0
    %v254 = vadd.f32 %v169, %v240
    %v255 = vadd.f32 %v172, %v243
    %v256 = vadd.f32 %v177, %v248
    %v257 = vadd.f32 %v180, %v251
    %vm258 = vsmask.f32 6400
    %v259 = vrot.slane %v45, 1
    %v260 = vrot.slane %v47, 2
    %v261 = vor.u32 %v259, %v260
    %v262 = vshrl.u32 %v41, 16
    %v264 = vrot.slane %v262, 1
    %v265 = vrot.slane %v51, 2
    %v266 = vor.u32 %v264, %v265
    %v267 = vsel %vm258, %v261, %v266
    %v268 = vrot.slane %v55, 1
    %v269 = vrot.slane %v57, 2
    %v270 = vor.u32 %v268, %v269
    %v271 = vshrl.u32 %v42, 16
    %v273 = vrot.slane %v271, 1
    %v274 = vrot.slane %v61, 2
    %v275 = vor.u32 %v273, %v274
    %v276 = vsel %vm258, %v270, %v275
    %s277 = scalar_lea.vmem %s1, 6
    %v278 = vld [vmem:[%s277] sm:$0x3]
    %v280 = vsel %vm67, %v267, 0
    %v283 = vsel %vm67, %v276, 0
    %v286 = vsel %vm74, %v278, 0
    %288 = vmatprep.subr.bf16.mxu0 0
    %289 = vmatpush1.bf16.msra.mxu0 0
    %290 = vmatprep.subr.bf16.mxu0 0
    %291 = vmatpush1.bf16.msra.mxu0 0
    %292 = vmatprep.subr.bf16.mxu0 0
    %293 = vmatpush1.bf16.msra.mxu0 0
    %294 = vmatprep.subr.bf16.mxu0 0
    %295 = vmatpush1.bf16.msra.mxu0 0
    %296 = vmatprep.subr.bf16.mxu0 0
    %297 = vmatpush1.bf16.msra.mxu0 0
    %298 = vmatprep.subr.bf16.mxu0 0
    %299 = vmatpush1.bf16.msra.mxu0 0
    %300 = vmatprep.subr.bf16.mxu0 0
    %301 = vmatpush1.bf16.msra.mxu0 0
    %302 = vmatprep.subr.bf16.mxu0 0
    %303 = vmatpush1.bf16.msra.mxu0 %v286
    %304 = vmatprep.subr.bf16.mxu0 0
    %305 = vmatpush2.bf16.msra.mxu0 0
    %306 = vmatprep.subr.bf16.mxu0 0
    %307 = vmatpush2.bf16.msra.mxu0 0
    %308 = vmatprep.subr.bf16.mxu0 0
    %309 = vmatpush2.bf16.msra.mxu0 0
    %310 = vmatprep.subr.bf16.mxu0 0
    %311 = vmatpush2.bf16.msra.mxu0 0
    %312 = vmatprep.subr.bf16.mxu0 0
    %313 = vmatpush2.bf16.msra.mxu0 0
    %314 = vmatprep.subr.bf16.mxu0 0
    %315 = vmatpush2.bf16.msra.mxu0 0
    %316 = vmatprep.subr.bf16.mxu0 0
    %317 = vmatpush2.bf16.msra.mxu0 0
    %318 = vmatprep.subr.bf16.mxu0 0
    %319 = vmatpush2.bf16.msra.mxu0 0
    %320 = vmatprep.mubr.bf16.mxu0 0
    %321 = vmatmul.mubr.bf16.gmra.mxu0 %v280
    %v322 = vpop.f32.mrf.mxu0
    %v323 = vadd.f32 0.0, %v322
    %v324 = vpop.f32.mrf.mxu0
    %v325 = vpop.f32.mrf.mxu0
    %v326 = vadd.f32 0.0, %v325
    %v327 = vpop.f32.mrf.mxu0
    %328 = vmatprep.mubr.bf16.mxu0 0
    %329 = vmatmul.mubr.bf16.gmra.mxu0 %v283
    %v330 = vpop.f32.mrf.mxu0
    %v331 = vadd.f32 0.0, %v330
    %v332 = vpop.f32.mrf.mxu0
    %v333 = vpop.f32.mrf.mxu0
    %v334 = vadd.f32 0.0, %v333
    %v335 = vpop.f32.mrf.mxu0
    %336 = vdwg.mxu0
    %v337 = vadd.f32 %v254, %v323
    %v338 = vadd.f32 %v255, %v326
    %v339 = vadd.f32 %v256, %v331
    %v340 = vadd.f32 %v257, %v334
    %vm341 = vcmask 1045504
    %v342 = vrot.slane %v38, 2
    %v343 = vrot.slane %v41, 2
    %v344 = vsel %vm341, %v342, %v343
    %v345 = vrot.slane %v40, 2
    %v346 = vrot.slane %v42, 2
    %v347 = vsel %vm341, %v345, %v346
    %s348 = scalar_lea.vmem %s1, 8
    %v349 = vld [vmem:[%s348] sm:$0x3]
    %v351 = vsel %vm67, %v344, 0
    %v354 = vsel %vm67, %v347, 0
    %v357 = vsel %vm74, %v349, 0
    %359 = vmatprep.subr.bf16.mxu0 0
    %360 = vmatpush1.bf16.msra.mxu0 0
    %361 = vmatprep.subr.bf16.mxu0 0
    %362 = vmatpush1.bf16.msra.mxu0 0
    %363 = vmatprep.subr.bf16.mxu0 0
    %364 = vmatpush1.bf16.msra.mxu0 0
    %365 = vmatprep.subr.bf16.mxu0 0
    %366 = vmatpush1.bf16.msra.mxu0 0
    %367 = vmatprep.subr.bf16.mxu0 0
    %368 = vmatpush1.bf16.msra.mxu0 0
    %369 = vmatprep.subr.bf16.mxu0 0
    %370 = vmatpush1.bf16.msra.mxu0 0
    %371 = vmatprep.subr.bf16.mxu0 0
    %372 = vmatpush1.bf16.msra.mxu0 0
    %373 = vmatprep.subr.bf16.mxu0 0
    %374 = vmatpush1.bf16.msra.mxu0 %v357
    %375 = vmatprep.subr.bf16.mxu0 0
    %376 = vmatpush2.bf16.msra.mxu0 0
    %377 = vmatprep.subr.bf16.mxu0 0
    %378 = vmatpush2.bf16.msra.mxu0 0
    %379 = vmatprep.subr.bf16.mxu0 0
    %380 = vmatpush2.bf16.msra.mxu0 0
    %381 = vmatprep.subr.bf16.mxu0 0
    %382 = vmatpush2.bf16.msra.mxu0 0
    %383 = vmatprep.subr.bf16.mxu0 0
    %384 = vmatpush2.bf16.msra.mxu0 0
    %385 = vmatprep.subr.bf16.mxu0 0
    %386 = vmatpush2.bf16.msra.mxu0 0
    %387 = vmatprep.subr.bf16.mxu0 0
    %388 = vmatpush2.bf16.msra.mxu0 0
    %389 = vmatprep.subr.bf16.mxu0 0
    %390 = vmatpush2.bf16.msra.mxu0 0
    %391 = vmatprep.mubr.bf16.mxu0 0
    %392 = vmatmul.mubr.bf16.gmra.mxu0 %v351
    %v393 = vpop.f32.mrf.mxu0
    %v394 = vadd.f32 0.0, %v393
    %v395 = vpop.f32.mrf.mxu0
    %v396 = vpop.f32.mrf.mxu0
    %v397 = vadd.f32 0.0, %v396
    %v398 = vpop.f32.mrf.mxu0
    %399 = vmatprep.mubr.bf16.mxu0 0
    %400 = vmatmul.mubr.bf16.gmra.mxu0 %v354
    %v401 = vpop.f32.mrf.mxu0
    %v402 = vadd.f32 0.0, %v401
    %v403 = vpop.f32.mrf.mxu0
    %v404 = vpop.f32.mrf.mxu0
    %v405 = vadd.f32 0.0, %v404
    %v406 = vpop.f32.mrf.mxu0
    %407 = vdwg.mxu0
    %v408 = vadd.f32 %v337, %v394
    %v409 = vadd.f32 %v338, %v397
    %v410 = vadd.f32 %v339, %v402
    %v411 = vadd.f32 %v340, %v405
    %v412 = vld [vmem:[%s2] sm:$0x1]
    %v414 = vlaneseq
    %v415 = vshrl.u32 %v414, 7
    %v416 = vsub.s32 0, %v415
    %v417 = vrot.slane %v412, %v416
    %v419 = vadd.f32 %v408, %v417
    %v420 = vadd.f32 %v409, %v417
    %v421 = vadd.f32 %v410, %v417
    %v422 = vadd.f32 %v411, %v417
    %v423 = vmax.f32 %v419, 0.0
    %v424 = vmax.f32 %v420, 0.0
    %v425 = vmax.f32 %v421, 0.0
    %v426 = vmax.f32 %v422, 0.0
    %vm427 = vcmask 261120
    %428 = vst.msk [vmem:[#allocation2] sm:$0xff] %vm427, %v423
    %429 = vst.msk [vmem:[#allocation2 + $0x8] sm:$0xff] %vm427, %v424
    %430 = vst.msk [vmem:[#allocation2 + $0x10] sm:$0xff] %vm427, %v425
    %431 = vst.msk [vmem:[#allocation2 + $0x18] sm:$0xff] %vm427, %v426
    %v432 = vsel %vm427, %v423, 0.0
    %v433 = vsel %vm427, %v424, 0.0
    %v434 = vadd.f32 %v432, %v433
    %v435 = vsel %vm427, %v425, 0.0
    %v436 = vadd.f32 %v434, %v435
    %v437 = vsel %vm427, %v426, 0.0
    %v438 = vadd.f32 %v436, %v437
    %v439 = vrot.slane %v438, 4
    %v440 = vadd.f32 %v438, %v439
    %v441 = vrot.slane %v440, 2
    %v442 = vadd.f32 %v440, %v441
    %v443 = vrot.slane %v442, 1
    %v444 = vadd.f32 %v442, %v443
    %v445 = vmul.f32 %v423, %v423
    %v446 = vmul.f32 %v424, %v424
    %v447 = vmul.f32 %v425, %v425
    %v448 = vmul.f32 %v426, %v426
    %v449 = vsel %vm427, %v445, 0.0
    %v450 = vsel %vm427, %v446, 0.0
    %v451 = vadd.f32 %v449, %v450
    %v452 = vsel %vm427, %v447, 0.0
    %v453 = vadd.f32 %v451, %v452
    %v454 = vsel %vm427, %v448, 0.0
    %v455 = vadd.f32 %v453, %v454
    %v456 = vrot.slane %v455, 4
    %v457 = vadd.f32 %v455, %v456
    %v458 = vrot.slane %v457, 2
    %v459 = vadd.f32 %v457, %v458
    %v460 = vrot.slane %v459, 1
    %v461 = vadd.f32 %v459, %v460
    %v462 = vsel %vm35, %v444, %v461
    %vm463 = vcmask 254976
    %464 = vst.msk [vmem:[#allocation4] sm:$0x3] %vm463, %v462
    // Predicated region
    $region14: #{tpu_custom_call.1} parent=1 // pred_check
      _
    $region15: #{tpu_custom_call.1} parent=1 // pred_check_branch
      %466 = sbr.rel (0) target = $region17
    $region16: #{tpu_custom_call.1} parent=1 // pred_region
      %s468 = ssub.s32 512, 512
      %469 = vsyncadd [#allocation3], %s468
      %s470 = sshll.u32 [#allocation2], 4
      %s471 = int_to_ptr.vmem [resolvable:$true] %s470
      %476 = dma.vmem_to_hbm [thread:$0]  %s471, 512, %s3, [#allocation3], 128, 128, 8
    $region17: #{tpu_custom_call.1} parent=1 // pred_fallthru
      _
    // Predicated region
    $region18: #{tpu_custom_call.1} parent=1 // pred_check
      _
    $region19: #{tpu_custom_call.1} parent=1 // pred_check_branch
      %478 = sbr.rel (0) target = $region21
    $region20: #{tpu_custom_call.1} parent=1 // pred_region
      %s480 = ssub.s32 32, 32
      %481 = vsyncadd [#allocation5], %s480
      %s483 = sshll.u32 [#allocation4], 4
      %s484 = int_to_ptr.vmem [resolvable:$true] %s483
      %486 = dma.vmem_to_hbm [thread:$0]  %s484, 32, %s4, [#allocation5]
    $region21: #{tpu_custom_call.1} parent=1 // pred_fallthru
      _
    // Predicated region
    $region22: #{tpu_custom_call.1} parent=1 // pred_check
      _
    $region23: #{tpu_custom_call.1} parent=1 // pred_check_branch
      %488 = sbr.rel (0) target = $region25
    $region24: #{tpu_custom_call.1} parent=1 // pred_region
      %489 = dma.done [#allocation3], 512
    $region25: #{tpu_custom_call.1} parent=1 // pred_fallthru
      _
    // Predicated region
    $region26: #{tpu_custom_call.1} parent=1 // pred_check
      _
    $region27: #{tpu_custom_call.1} parent=1 // pred_check_branch
      %491 = sbr.rel (0) target = $region29
    $region28: #{tpu_custom_call.1} parent=1 // pred_region
      %492 = dma.done [#allocation5], 32
    $region29: #{tpu_custom_call.1} parent=1 // pred_fallthru
      _
    %493 = vsyncpa [#allocation3], 1
    %494 = vsyncpa [#allocation5], 1

</llo_original>
